<compile_context>
chip_gen: v6e
topology: v6e:2x2x1
jax: 0.10.0
libtpu: 0.0.40
codegen_flags: <defaults>
</compile_context>

<pallas_src>
import jax
import jax.numpy as jnp
from jax.experimental import pallas as pl
from jax.experimental.pallas import tpu as pltpu

_LANES = 128
# 4096 x 128 f32 block = 2 MiB. 3 arrays x 2 pipeline buffers = 12 MiB:
# fits v5e's 16 MiB default scoped VMEM, and is trivial against v6e (32/128 MiB)
# and v7x (32/64 MiB). At 3.2 TB/s a 2 MiB block is ~2 us of DMA per step, so
# the ~0.35 us fixed per-step overhead drops to ~10-15% (vs ~40% at 0.5 MiB).
_ROW_TILE = 4096
_VMEM_CAP = 48 << 20  # never request more than ~48 MiB (v7x physical is 64 MiB)


def _add_kernel(a_ref, b_ref, o_ref):
    # Pure elementwise add on a lane-dense VMEM tile.
    o_ref[...] = a_ref[...] + b_ref[...]


def elementwise_add(x766, x751, *, donate_first=False):
    # TODO(synk): standalone, this kernel is launch-overhead-bound for the
    # (1, 384, 7, 7) shape (~220 KB of traffic behind ~1-2 us of pallas_call
    # fixed cost); in the full model the residual add should be fused into the
    # producing conv / preceding Pallas kernel.
    assert x766.shape == x751.shape and x766.dtype == x751.dtype
    orig_shape = x766.shape
    total = x766.size

    if total % _LANES == 0:
        # Lane-dense view: (rows, 128) -> every vreg lane full, unmasked vst.
        # (384*7*7 = 18816 = 147*128, so no padding is ever needed here.)
        rows = total // _LANES
        a2 = x766.reshape(rows, _LANES)
        b2 = x751.reshape(rows, _LANES)
        block_rows = rows if rows <= _ROW_TILE else _ROW_TILE
        grid = (pl.cdiv(rows, block_rows),)
        block_shape = (block_rows, _LANES)
        out_shape2 = (rows, _LANES)
    else:
        # Ragged total (not hit by this module): no host-side pad/slice; present
        # the flat array as one full-extent block (full-extent dims are always
        # legal).
        # TODO(synk): for huge non-128-multiple inputs, tile the 128-aligned
        # body and handle the short tail with a masked pltpu.store.
        a2 = x766.reshape(1, total)
        b2 = x751.reshape(1, total)
        grid = (1,)
        block_shape = (1, total)
        out_shape2 = (1, total)

    block_bytes = block_shape[0] * block_shape[1] * a2.dtype.itemsize
    # 3 arrays x 2 pipeline buffers, 2x headroom; clamp to [2 MiB, 48 MiB].
    vmem_limit = min(max(2 * 6 * block_bytes, 2 << 20), _VMEM_CAP)

    # Only alias operand 0's buffer into the output when the caller guarantees
    # it is dead afterwards; otherwise XLA inserts a defensive copy (an extra
    # full-tensor HBM pass) that more than erases the saved output allocation.
    io_aliases = {0: 0} if donate_first else {}

    out2 = pl.pallas_call(
        _add_kernel,
        out_shape=jax.ShapeDtypeStruct(out_shape2, a2.dtype),
        grid=grid,
        in_specs=[
            pl.BlockSpec(block_shape, lambda i: (i, 0),
                         memory_space=pltpu.MemorySpace.VMEM),
            pl.BlockSpec(block_shape, lambda i: (i, 0),
                         memory_space=pltpu.MemorySpace.VMEM),
        ],
        out_specs=pl.BlockSpec(block_shape, lambda i: (i, 0),
                               memory_space=pltpu.MemorySpace.VMEM),
        input_output_aliases=io_aliases,
        compiler_params=pltpu.CompilerParams(
            # "parallel" lets v7x shard grid steps across its 2 TensorCores on
            # the large-tensor path (only engages when the grid has >= 2 steps).
            dimension_semantics=("parallel",),
            vmem_limit_bytes=vmem_limit,
        ),
    )(a2, b2)

    return out2.reshape(orig_shape)


if __name__ == "__main__":
    key = jax.random.PRNGKey(0)
    k1, k2 = jax.random.split(key)
    # Shapes consistent with the module's forward: [1, 384, 7, 7]
    x766 = jax.random.normal(k1, (1, 384, 7, 7), dtype=jnp.float32)
    x751 = jax.random.normal(k2, (1, 384, 7, 7), dtype=jnp.float32)

    out = elementwise_add(x766, x751)
    jax.block_until_ready(out)

    # Correctness check against plain JAX reference.
    ref = x766 + x751
    assert out.shape == (1, 384, 7, 7)
    assert out.dtype == ref.dtype
    assert jnp.allclose(out, ref, atol=1e-6, rtol=1e-6)

    print("KERNEL_OK")
</pallas_src>

<mosaic_0001>
module attributes {stable_mosaic.version = 11 : i64} {
  func.func @_add_kernel(%arg0: i32, %arg1: memref<147x128xf32, #tpu.memory_space<vmem>>, %arg2: memref<147x128xf32, #tpu.memory_space<vmem>>, %arg3: memref<147x128xf32, #tpu.memory_space<vmem>>) attributes {dimension_semantics = [#tpu.dimension_semantics<parallel>], iteration_bounds = array<i64: 1>, scalar_prefetch = 0 : i64, scratch_operands = 0 : i64, tpu.core_type = #tpu.core_type<tc>, window_params = [{transform_indices = @transform_0, window_bounds = array<i64: 147, 128>}, {transform_indices = @transform_1, window_bounds = array<i64: 147, 128>}, {transform_indices = @transform_2, window_bounds = array<i64: 147, 128>}]} {
    %c0 = arith.constant 0 : index
    %c0_0 = arith.constant 0 : index
    %0 = vector.load %arg1[%c0, %c0_0] : memref<147x128xf32, #tpu.memory_space<vmem>>, vector<147x128xf32>
    %c0_1 = arith.constant 0 : index
    %c0_2 = arith.constant 0 : index
    %1 = vector.load %arg2[%c0_1, %c0_2] : memref<147x128xf32, #tpu.memory_space<vmem>>, vector<147x128xf32>
    %2 = arith.addf %0, %1 : vector<147x128xf32>
    %c0_3 = arith.constant 0 : index
    %c0_4 = arith.constant 0 : index
    %3 = vector.load %arg3[%c0_3, %c0_4] : memref<147x128xf32, #tpu.memory_space<vmem>>, vector<147x128xf32>
    tpu.vector_store %arg3[%c0_3, %c0_4], %2 {strides = array<i32>} : memref<147x128xf32, #tpu.memory_space<vmem>>, vector<147x128xf32>,
    return
  }
  func.func @transform_0(%arg0: i32) -> (i32, i32) {
    %c0_i32 = arith.constant 0 : i32
    %c0_i32_0 = arith.constant 0 : i32
    return %arg0, %c0_i32 : i32, i32
  }
  func.func @transform_1(%arg0: i32) -> (i32, i32) {
    %c0_i32 = arith.constant 0 : i32
    %c0_i32_0 = arith.constant 0 : i32
    return %arg0, %c0_i32 : i32, i32
  }
  func.func @transform_2(%arg0: i32) -> (i32, i32) {
    %c0_i32 = arith.constant 0 : i32
    %c0_i32_0 = arith.constant 0 : i32
    return %arg0, %c0_i32 : i32, i32
  }
}

</mosaic_0001>

<llo_original>
// kernel: tpu_custom_call.1
$region0: #{tpu_custom_call.1}
  #allocation0 [shape = 'u32[]', space=smem, size = 0x4, offset = 0x4, fixed_abs, tag = 'smem constant byte address 0x4 - core index']
  #allocation1 [shape = 'u32[144,128]{1,0:T(1,128)}', space=vmem, size = 0x12000, scoped, tag = 'internal scratch']
  %s0 = inlined_call_operand.hbm [shape: f32[147,128], index: 0, kind: input, shape index: {}]
  %s1 = inlined_call_operand.hbm [shape: f32[147,128], index: 1, kind: input, shape index: {}]
  %s2 = inlined_call_operand.hbm [shape: f32[147,128], index: 2, kind: output, shape index: {}]
  %s3 = sld [smem:[#allocation0]]
  $region26: #{tpu_custom_call.1} parent=0
    _
  %s5 = ssub.s32 1, %s3
  %s6 = scalar_select 0, %s5, %s3
  $region1: #{tpu_custom_call.1} parent=0
    #allocation2 [shape = 'u8[77824]{0}', space=vmem, size = 0x13000, scoped, tag = 'input window, operand 0, single buffered']
    #allocation3 [shape = 's32[1]{0}', space=sflag, size = 0x4, scoped, tag = 'scoped memory for tpu_custom_call.1']
    #allocation4 [shape = 's32[1]{0}', space=sflag, size = 0x4, scoped, tag = 'scoped memory for tpu_custom_call.1']
    #allocation5 [shape = 'u8[77824]{0}', space=vmem, size = 0x13000, scoped, tag = 'input window, operand 1, single buffered']
    #allocation6 [shape = 's32[1]{0}', space=sflag, size = 0x4, scoped, tag = 'scoped memory for tpu_custom_call.1']
    #allocation7 [shape = 'u8[77824]{0}', space=vmem, size = 0x13000, scoped, tag = 'output window, operand 0, single buffered']
    %7 = vsyncpa [#allocation3], 0
    %8 = vsyncpa [#allocation6], 0
    %9 = vsyncpa [#allocation4], 0
    // Predicated region
    $region2: #{tpu_custom_call.1} parent=1 // pred_check
      _
    $region3: #{tpu_custom_call.1} parent=1 // pred_check_branch
      %11 = sbr.rel (0) target = $region5
    $region4: #{tpu_custom_call.1} parent=1 // pred_region
      %s13 = ssub.s32 2432, 2432
      %14 = vsyncadd [#allocation3], %s13
      %s15 = sshll.u32 [#allocation2], 4
      %s16 = int_to_ptr.vmem [resolvable:$true] %s15
      %21 = dma.hbm_to_vmem [thread:$0]  %s0, 2432, %s16, [#allocation3], 128, 128, 8
    $region5: #{tpu_custom_call.1} parent=1 // pred_fallthru
      _
    // Predicated region
    $region6: #{tpu_custom_call.1} parent=1 // pred_check
      _
    $region7: #{tpu_custom_call.1} parent=1 // pred_check_branch
      %23 = sbr.rel (0) target = $region9
    $region8: #{tpu_custom_call.1} parent=1 // pred_region
      %s25 = ssub.s32 2432, 2432
      %26 = vsyncadd [#allocation6], %s25
      %s27 = sshll.u32 [#allocation5], 4
      %s28 = int_to_ptr.vmem [resolvable:$true] %s27
      %33 = dma.hbm_to_vmem [thread:$0]  %s1, 2432, %s28, [#allocation6], 128, 128, 8
    $region9: #{tpu_custom_call.1} parent=1 // pred_fallthru
      _
    // Predicated region
    $region10: #{tpu_custom_call.1} parent=1 // pred_check
      _
    $region11: #{tpu_custom_call.1} parent=1 // pred_check_branch
      %35 = sbr.rel (0) target = $region13
    $region12: #{tpu_custom_call.1} parent=1 // pred_region
      %36 = dma.done [#allocation3], 2432
    $region13: #{tpu_custom_call.1} parent=1 // pred_fallthru
      _
    // Predicated region
    $region14: #{tpu_custom_call.1} parent=1 // pred_check
      _
    $region15: #{tpu_custom_call.1} parent=1 // pred_check_branch
      %38 = sbr.rel (0) target = $region17
    $region16: #{tpu_custom_call.1} parent=1 // pred_region
      %39 = dma.done [#allocation6], 2432
    $region17: #{tpu_custom_call.1} parent=1 // pred_fallthru
      _
    %v40 = vld [vmem:[#allocation2] sm:$0xff]
    %v41 = vld [vmem:[#allocation2 + $0x8] sm:$0xff]
    %v42 = vld [vmem:[#allocation2 + $0x10] sm:$0xff]
    %v43 = vld [vmem:[#allocation2 + $0x18] sm:$0xff]
    %v44 = vld [vmem:[#allocation2 + $0x20] sm:$0xff]
    %v45 = vld [vmem:[#allocation2 + $0x28] sm:$0xff]
    %v46 = vld [vmem:[#allocation2 + $0x30] sm:$0xff]
    %v47 = vld [vmem:[#allocation2 + $0x38] sm:$0xff]
    %v48 = vld [vmem:[#allocation2 + $0x40] sm:$0xff]
    %v49 = vld [vmem:[#allocation2 + $0x48] sm:$0xff]
    %v50 = vld [vmem:[#allocation2 + $0x50] sm:$0xff]
    %v51 = vld [vmem:[#allocation2 + $0x58] sm:$0xff]
    %v52 = vld [vmem:[#allocation2 + $0x60] sm:$0xff]
    %v53 = vld [vmem:[#allocation2 + $0x68] sm:$0xff]
    %v54 = vld [vmem:[#allocation2 + $0x70] sm:$0xff]
    %v55 = vld [vmem:[#allocation2 + $0x78] sm:$0xff]
    %v56 = vld [vmem:[#allocation2 + $0x80] sm:$0xff]
    %v57 = vld [vmem:[#allocation2 + $0x88] sm:$0xff]
    %v58 = vld [vmem:[#allocation2 + $0x90] sm:$0x7]
    %v59 = vld [vmem:[#allocation5] sm:$0xff]
    %v60 = vld [vmem:[#allocation5 + $0x8] sm:$0xff]
    %v61 = vld [vmem:[#allocation5 + $0x10] sm:$0xff]
    %v62 = vld [vmem:[#allocation5 + $0x18] sm:$0xff]
    %v63 = vld [vmem:[#allocation5 + $0x20] sm:$0xff]
    %v64 = vld [vmem:[#allocation5 + $0x28] sm:$0xff]
    %v65 = vld [vmem:[#allocation5 + $0x30] sm:$0xff]
    %v66 = vld [vmem:[#allocation5 + $0x38] sm:$0xff]
    %v67 = vld [vmem:[#allocation5 + $0x40] sm:$0xff]
    %v68 = vld [vmem:[#allocation5 + $0x48] sm:$0xff]
    %v69 = vld [vmem:[#allocation5 + $0x50] sm:$0xff]
    %v70 = vld [vmem:[#allocation5 + $0x58] sm:$0xff]
    %v71 = vld [vmem:[#allocation5 + $0x60] sm:$0xff]
    %v72 = vld [vmem:[#allocation5 + $0x68] sm:$0xff]
    %v73 = vld [vmem:[#allocation5 + $0x70] sm:$0xff]
    %v74 = vld [vmem:[#allocation5 + $0x78] sm:$0xff]
    %v75 = vld [vmem:[#allocation5 + $0x80] sm:$0xff]
    %v76 = vld [vmem:[#allocation5 + $0x88] sm:$0xff]
    %v77 = vld [vmem:[#allocation5 + $0x90] sm:$0x7]
    %v78 = vadd.f32 %v40, %v59
    %v79 = vadd.f32 %v41, %v60
    %v80 = vadd.f32 %v42, %v61
    %v81 = vadd.f32 %v43, %v62
    %v82 = vadd.f32 %v44, %v63
    %v83 = vadd.f32 %v45, %v64
    %v84 = vadd.f32 %v46, %v65
    %v85 = vadd.f32 %v47, %v66
    %v86 = vadd.f32 %v48, %v67
    %v87 = vadd.f32 %v49, %v68
    %v88 = vadd.f32 %v50, %v69
    %v89 = vadd.f32 %v51, %v70
    %v90 = vadd.f32 %v52, %v71
    %v91 = vadd.f32 %v53, %v72
    %v92 = vadd.f32 %v54, %v73
    %v93 = vadd.f32 %v55, %v74
    %v94 = vadd.f32 %v56, %v75
    %v95 = vadd.f32 %v57, %v76
    %v96 = vadd.f32 %v58, %v77
    %97 = vst [vmem:[#allocation7] sm:$0xff] %v78
    %98 = vst [vmem:[#allocation7 + $0x8] sm:$0xff] %v79
    %99 = vst [vmem:[#allocation7 + $0x10] sm:$0xff] %v80
    %100 = vst [vmem:[#allocation7 + $0x18] sm:$0xff] %v81
    %101 = vst [vmem:[#allocation7 + $0x20] sm:$0xff] %v82
    %102 = vst [vmem:[#allocation7 + $0x28] sm:$0xff] %v83
    %103 = vst [vmem:[#allocation7 + $0x30] sm:$0xff] %v84
    %104 = vst [vmem:[#allocation7 + $0x38] sm:$0xff] %v85
    %105 = vst [vmem:[#allocation7 + $0x40] sm:$0xff] %v86
    %106 = vst [vmem:[#allocation7 + $0x48] sm:$0xff] %v87
    %107 = vst [vmem:[#allocation7 + $0x50] sm:$0xff] %v88
    %108 = vst [vmem:[#allocation7 + $0x58] sm:$0xff] %v89
    %109 = vst [vmem:[#allocation7 + $0x60] sm:$0xff] %v90
    %110 = vst [vmem:[#allocation7 + $0x68] sm:$0xff] %v91
    %111 = vst [vmem:[#allocation7 + $0x70] sm:$0xff] %v92
    %112 = vst [vmem:[#allocation7 + $0x78] sm:$0xff] %v93
    %113 = vst [vmem:[#allocation7 + $0x80] sm:$0xff] %v94
    %114 = vst [vmem:[#allocation7 + $0x88] sm:$0xff] %v95
    %115 = vst [vmem:[#allocation7 + $0x90] sm:$0x7] %v96
    // Predicated region
    $region18: #{tpu_custom_call.1} parent=1 // pred_check
      _
    $region19: #{tpu_custom_call.1} parent=1 // pred_check_branch
      %117 = sbr.rel (0) target = $region21
    $region20: #{tpu_custom_call.1} parent=1 // pred_region
      %s119 = ssub.s32 2432, 2432
      %120 = vsyncadd [#allocation4], %s119
      %s121 = sshll.u32 [#allocation7], 4
      %s122 = int_to_ptr.vmem [resolvable:$true] %s121
      %127 = dma.vmem_to_hbm [thread:$0]  %s122, 2432, %s2, [#allocation4], 128, 128, 8
    $region21: #{tpu_custom_call.1} parent=1 // pred_fallthru
      _
    // Predicated region
    $region22: #{tpu_custom_call.1} parent=1 // pred_check
      _
    $region23: #{tpu_custom_call.1} parent=1 // pred_check_branch
      %129 = sbr.rel (0) target = $region25
    $region24: #{tpu_custom_call.1} parent=1 // pred_region
      %130 = dma.done [#allocation4], 2432
    $region25: #{tpu_custom_call.1} parent=1 // pred_fallthru
      _
    %131 = vsyncpa [#allocation3], 1
    %132 = vsyncpa [#allocation6], 1
    %133 = vsyncpa [#allocation4], 1

</llo_original>
